<compile_context>
chip_gen: v7x
topology: tpu7x:2x2x1
jax: 0.10.0
libtpu: 0.0.40
codegen_flags: <defaults>
</compile_context>

<pallas_src>
import functools

import jax
import jax.numpy as jnp
from jax.experimental import pallas as pl
from jax.experimental.pallas import tpu as pltpu


# ---------------------------------------------------------------------------
# tiling helpers
# ---------------------------------------------------------------------------
def _round_up(x, m):
    return ((x + m - 1) // m) * m


def _cdiv(a, b):
    return -(-a // b)


_VMEM_LIMIT = 56 * 1024 * 1024    # scoped-VMEM limit: below v7x's 64 MiB physical
_VMEM_BUDGET = 40 * 1024 * 1024   # target for the double-buffered working set


def _tile_plan(M, K, N, out_bytes):
    """(Mp, Kp, Np, tm, tk, tn): (16,128)-aligned blocks, K-tiled only if the
    double-buffered live set would exceed the VMEM budget."""
    Kp = _round_up(K, 128)
    Np = _round_up(N, 128)
    # tn=256 matches the 2x256^2 MXU, but keep >=2 N tiles so both v7x TCs get work.
    tn = 256 if (Np % 256 == 0 and Np >= 512) else 128
    # tm: multiple of 16 (bf16 sublane packing); spread M over cdiv(M,512) tiles
    # instead of padding M all the way up to 512.
    n_m = max(1, _cdiv(M, 512))
    tm = min(512, _round_up(_cdiv(M, n_m), 16))
    Mp = _round_up(M, tm)

    def live_bytes(tk_):
        return (2 * tm * tk_ * 2          # x tile (bf16, double-buffered)
                + 2 * tk_ * tn * 2        # w tile (bf16, double-buffered)
                + 3 * 2 * tn * 4          # bias / gamma / beta tiles
                + 2 * tm * tn * out_bytes # output tile (double-buffered)
                + tm * tn * 4)            # f32 accumulator scratch

    nk, tk = 1, Kp
    while live_bytes(tk) > _VMEM_BUDGET and tk > 512:
        nk += 1
        tk = _round_up(_cdiv(Kp, nk), 128)
    Kp = nk * tk
    return Mp, Kp, Np, tm, tk, tn


def _pad2(a, rows, cols, dtype):
    return jnp.pad(a.astype(dtype), ((0, rows - a.shape[0]), (0, cols - a.shape[1])))


# ---------------------------------------------------------------------------
# Pallas kernels
# ---------------------------------------------------------------------------
def _linear_kernel(x_ref, w_ref, b_ref, o_ref, acc_ref):
    # x_ref: (tm, tk) bf16 | w_ref: (tk, tn) bf16 (pre-transposed weight)
    # b_ref: (1, tn) f32   | o_ref: (tm, tn) out_dtype | acc_ref: (tm, tn) f32
    k = pl.program_id(2)

    @pl.when(k == 0)
    def _():
        acc_ref[...] = jnp.zeros_like(acc_ref)

    acc_ref[...] += jnp.dot(x_ref[...], w_ref[...],
                            preferred_element_type=jnp.float32)

    @pl.when(k == pl.num_programs(2) - 1)
    def _():
        o_ref[...] = (acc_ref[...] + b_ref[...]).astype(o_ref.dtype)


def _make_linear_bn_relu_kernel(group_size, num_groups, eps):
    """Linear + per-group BatchNorm (training batch stats over axis 0) + ReLU,
    fused into the matmul epilogue.  Requires all M rows resident in the tile."""
    def kernel(x_ref, w_ref, b_ref, g_ref, bt_ref, o_ref, acc_ref):
        k = pl.program_id(2)

        @pl.when(k == 0)
        def _():
            acc_ref[...] = jnp.zeros_like(acc_ref)

        acc_ref[...] += jnp.dot(x_ref[...], w_ref[...],
                                preferred_element_type=jnp.float32)

        @pl.when(k == pl.num_programs(2) - 1)
        def _():
            h = acc_ref[...] + b_ref[...]
            row = jax.lax.broadcasted_iota(jnp.int32, (h.shape[0], 1), 0)
            out = jnp.zeros_like(h)
            for g in range(num_groups):           # trace-time unrolled (tiny)
                lo = g * group_size
                mask = (row >= lo) & (row < lo + group_size)
                mean = jnp.sum(jnp.where(mask, h, 0.0), axis=0,
                               keepdims=True) / group_size
                var = jnp.sum(jnp.where(mask, jnp.square(h - mean), 0.0),
                              axis=0, keepdims=True) / group_size
                out = jnp.where(mask, (h - mean) * jax.lax.rsqrt(var + eps), out)
            out = jnp.maximum(out * g_ref[...] + bt_ref[...], 0.0)
            o_ref[...] = out.astype(o_ref.dtype)

    return kernel


# ---------------------------------------------------------------------------
# Pallas wrappers
# ---------------------------------------------------------------------------
def linear_pallas(x, w, b, *, out_dtype=jnp.float32):
    """y = x @ w.T + b (PyTorch nn.Linear).  x: (M, K), w: (N, K), b: (N,)."""
    M, K = x.shape
    N = w.shape[0]
    out_bytes = jnp.dtype(out_dtype).itemsize
    Mp, Kp, Np, tm, tk, tn = _tile_plan(M, K, N, out_bytes)

    xp = _pad2(x, Mp, Kp, jnp.bfloat16)
    wtp = _pad2(w.T, Kp, Np, jnp.bfloat16)     # one-time HBM transpose, (K, N)
    bp = jnp.pad(b.astype(jnp.float32), (0, Np - N)).reshape(1, Np)

    grid = (Mp // tm, Np // tn, Kp // tk)
    out = pl.pallas_call(
        _linear_kernel,
        out_shape=jax.ShapeDtypeStruct((Mp, Np), out_dtype),
        grid=grid,
        in_specs=[
            pl.BlockSpec((tm, tk), lambda i, j, k: (i, k)),   # x row-tile
            pl.BlockSpec((tk, tn), lambda i, j, k: (k, j)),   # w^T tile
            pl.BlockSpec((1, tn), lambda i, j, k: (0, j)),    # bias column-tile
        ],
        out_specs=pl.BlockSpec((tm, tn), lambda i, j, k: (i, j)),
        scratch_shapes=[pltpu.VMEM((tm, tn), jnp.float32)],
        compiler_params=pltpu.CompilerParams(
            dimension_semantics=("parallel", "parallel", "arbitrary"),
            vmem_limit_bytes=_VMEM_LIMIT),
        cost_estimate=pl.CostEstimate(
            flops=2 * M * N * K, transcendentals=0,
            bytes_accessed=(M * K + K * N) * 2 + N * 4 + M * N * out_bytes),
    )(xp, wtp, bp)
    return out[:M, :N]


def _bn_relu_grouped(h, gamma, beta, group_size, eps=1e-5):
    M, N = h.shape
    G = M // group_size
    hg = h.reshape(G, group_size, N)
    mean = jnp.mean(hg, axis=1, keepdims=True)
    var = jnp.mean(jnp.square(hg - mean), axis=1, keepdims=True)
    hn = ((hg - mean) * jax.lax.rsqrt(var + eps)).reshape(M, N)
    return jnp.maximum(hn * gamma + beta, 0.0)


def linear_bn_relu_pallas(x, w, b, gamma, beta, *, group_size,
                          out_dtype=jnp.float32, eps=1e-5):
    """nn.Linear -> nn.BatchNorm1d (training batch stats per group of rows)
    -> ReLU, fused into the matmul epilogue when all rows fit one M tile."""
    M, K = x.shape
    N = w.shape[0]
    assert M % group_size == 0
    num_groups = M // group_size
    out_bytes = jnp.dtype(out_dtype).itemsize
    Mp, Kp, Np, tm, tk, tn = _tile_plan(M, K, N, out_bytes)

    if Mp != tm:
        # TODO(synk): batches > 512 rows fall back to unfused BN/ReLU in XLA.
        h = linear_pallas(x, w, b, out_dtype=jnp.float32)
        return _bn_relu_grouped(h, gamma, beta, group_size, eps).astype(out_dtype)

    xp = _pad2(x, Mp, Kp, jnp.bfloat16)
    wtp = _pad2(w.T, Kp, Np, jnp.bfloat16)
    bp = jnp.pad(b.astype(jnp.float32), (0, Np - N)).reshape(1, Np)
    gp = jnp.pad(gamma.astype(jnp.float32), (0, Np - N)).reshape(1, Np)
    btp = jnp.pad(beta.astype(jnp.float32), (0, Np - N)).reshape(1, Np)

    grid = (1, Np // tn, Kp // tk)
    out = pl.pallas_call(
        _make_linear_bn_relu_kernel(group_size, num_groups, eps),
        out_shape=jax.ShapeDtypeStruct((Mp, Np), out_dtype),
        grid=grid,
        in_specs=[
            pl.BlockSpec((tm, tk), lambda i, j, k: (i, k)),
            pl.BlockSpec((tk, tn), lambda i, j, k: (k, j)),
            pl.BlockSpec((1, tn), lambda i, j, k: (0, j)),
            pl.BlockSpec((1, tn), lambda i, j, k: (0, j)),
            pl.BlockSpec((1, tn), lambda i, j, k: (0, j)),
        ],
        out_specs=pl.BlockSpec((tm, tn), lambda i, j, k: (i, j)),
        scratch_shapes=[pltpu.VMEM((tm, tn), jnp.float32)],
        compiler_params=pltpu.CompilerParams(
            dimension_semantics=("parallel", "parallel", "arbitrary"),
            vmem_limit_bytes=_VMEM_LIMIT),
        cost_estimate=pl.CostEstimate(
            flops=2 * M * N * K, transcendentals=num_groups * N,
            bytes_accessed=(M * K + K * N) * 2 + 3 * N * 4 + M * N * out_bytes),
    )(xp, wtp, bp, gp, btp)
    return out[:M, :N]


# ---------------------------------------------------------------------------
# Pure-JAX reference ops with the SAME precision policy (bf16 operands,
# f32 accumulation, bf16 intermediates) so the kernels check tightly.
# ---------------------------------------------------------------------------
def _ref_linear(x, w, b, *, out_dtype=jnp.float32):
    y = jnp.dot(x.astype(jnp.bfloat16), w.astype(jnp.bfloat16).T,
                preferred_element_type=jnp.float32) + b.astype(jnp.float32)
    return y.astype(out_dtype)


def _ref_linear_bn_relu(x, w, b, gamma, beta, *, group_size,
                        out_dtype=jnp.float32, eps=1e-5):
    h = _ref_linear(x, w, b, out_dtype=jnp.float32)
    return _bn_relu_grouped(h, gamma, beta, group_size, eps).astype(out_dtype)


PALLAS_OPS = {"linear": linear_pallas, "linear_bn_relu": linear_bn_relu_pallas}
REF_OPS = {"linear": _ref_linear, "linear_bn_relu": _ref_linear_bn_relu}


# ---------------------------------------------------------------------------
# Model glue (mirrors the PyTorch module; ops injected so the reference runs
# the exact same graph / precision policy).
# ---------------------------------------------------------------------------
def mlp_forward(x, p, ops, *, group_size, out_dtype=jnp.float32):
    """nn.Linear -> nn.BatchNorm1d (training batch stats) -> ReLU -> nn.Linear."""
    h = ops["linear_bn_relu"](x, p["w1"], p["b1"], p["gamma"], p["beta"],
                              group_size=group_size, out_dtype=jnp.bfloat16)
    return ops["linear"](h, p["w2"], p["b2"], out_dtype=out_dtype)


def encoder_forward(x, p, patch_size, ops):
    """Backbone stem: patch embedding (rearrange + Linear) + mean pool.
    TODO(synk): the original backbone's attention blocks are an injected
    constructor dependency; a patch-embed + mean-pool stem stands in for it."""
    B, C, H, W = x.shape
    hP, wP = H // patch_size, W // patch_size
    xr = x.reshape(B, C, hP, patch_size, wP, patch_size)
    xr = jnp.transpose(xr, (0, 2, 4, 3, 5, 1))                   # b h w p1 p2 c
    patches = xr.reshape(B * hP * wP, patch_size * patch_size * C)
    tok = ops["linear"](patches, p["w_patch"], p["b_patch"], out_dtype=jnp.bfloat16)
    tok = tok.reshape(B, hP * wP, -1).astype(jnp.float32)
    return jnp.mean(tok, axis=1)                                  # (B, emb)


def byol_forward(x1, x2, online, target, *, patch_size, momentum, ops):
    """BYOL.forward: EMA update of the target network, online
    encoder/projector/predictor and target encoder/projector (stop_gradient) on
    both views.  The two views are batched along M so each weight set gets one
    matmul call; BatchNorm stats stay per-view (group_size = per-view batch),
    matching the separate per-view calls of the PyTorch module."""
    online_sub = {"encoder": online["encoder"], "projector": online["projector"]}
    new_target = jax.tree_util.tree_map(
        lambda k, q: k * momentum + q * (1.0 - momentum), target, online_sub)

    B = x1.shape[0]
    x12 = jnp.concatenate([x1, x2], axis=0)        # (2B, C, H, W)

    y = encoder_forward(x12, online["encoder"], patch_size, ops)
    z = mlp_forward(y, online["projector"], ops, group_size=B)
    p = mlp_forward(z, online["predictor"], ops, group_size=B)

    yt = encoder_forward(x12, new_target["encoder"], patch_size, ops)
    zt = jax.lax.stop_gradient(
        mlp_forward(yt, new_target["projector"], ops, group_size=B))

    return (p[:B], p[B:]), (zt[:B], zt[B:]), new_target


# ---------------------------------------------------------------------------
# Parameter init (PyTorch nn.Linear default: U(-1/sqrt(fan_in), 1/sqrt(fan_in)))
# ---------------------------------------------------------------------------
def init_linear(key, out_dim, in_dim):
    kw, kb = jax.random.split(key)
    bound = in_dim ** -0.5
    w = jax.random.uniform(kw, (out_dim, in_dim), jnp.float32, -bound, bound)
    b = jax.random.uniform(kb, (out_dim,), jnp.float32, -bound, bound)
    return w, b


def init_mlp(key, in_dim, hidden_dim, out_dim):
    k1, k2 = jax.random.split(key)
    w1, b1 = init_linear(k1, hidden_dim, in_dim)
    w2, b2 = init_linear(k2, out_dim, hidden_dim)
    return {"w1": w1, "b1": b1,
            "gamma": jnp.ones((hidden_dim,), jnp.float32),
            "beta": jnp.zeros((hidden_dim,), jnp.float32),
            "w2": w2, "b2": b2}


if __name__ == "__main__":
    key = jax.random.PRNGKey(0)
    kx1, kx2, kenc, kproj, kpred = jax.random.split(key, 5)

    # Small demo shapes (spec defaults: emb 512, proj 256, hidden 4096)
    B, C, H, W = 2, 3, 16, 16
    PATCH = 4
    EMB = 64
    PROJ_HID, PROJ = 128, 64
    PRED_HID, PRED = 128, 64
    MOMENTUM = 0.99

    x1 = jax.random.normal(kx1, (B, C, H, W), jnp.float32)
    x2 = jax.random.normal(kx2, (B, C, H, W), jnp.float32)

    w_patch, b_patch = init_linear(kenc, EMB, PATCH * PATCH * C)
    online = {
        "encoder": {"w_patch": w_patch, "b_patch": b_patch},
        "projector": init_mlp(kproj, EMB, PROJ_HID, PROJ),
        "predictor": init_mlp(kpred, PROJ, PRED_HID, PRED),
    }
    # target_encoder / target_projector = deepcopy(online ...)
    target = {"encoder": online["encoder"], "projector": online["projector"]}

    fwd = jax.jit(functools.partial(
        byol_forward, patch_size=PATCH, momentum=MOMENTUM, ops=PALLAS_OPS))
    ref = jax.jit(functools.partial(
        byol_forward, patch_size=PATCH, momentum=MOMENTUM, ops=REF_OPS))

    (p1, p2), (z1, z2), new_target = jax.block_until_ready(fwd(x1, x2, online, target))
    (rp1, rp2), (rz1, rz2), _ = jax.block_until_ready(ref(x1, x2, online, target))

    assert p1.shape == (B, PRED) and p2.shape == (B, PRED)
    assert z1.shape == (B, PROJ) and z2.shape == (B, PROJ)
    for got, want in [(p1, rp1), (p2, rp2), (z1, rz1), (z2, rz2)]:
        err = float(jnp.max(jnp.abs(got - want)))
        assert jnp.allclose(got, want, atol=5e-3, rtol=5e-3), err

    print("KERNEL_OK")
</pallas_src>

<mosaic_0001>
module attributes {stable_mosaic.version = 11 : i64} {
  func.func @_linear_kernel(%arg0: i32, %arg1: i32, %arg2: i32, %arg3: memref<64x128xbf16, #tpu.memory_space<vmem>>, %arg4: memref<128x128xbf16, #tpu.memory_space<vmem>>, %arg5: memref<1x128xf32, #tpu.memory_space<vmem>>, %arg6: memref<64x128xbf16, #tpu.memory_space<vmem>>, %arg7: memref<64x128xf32, #tpu.memory_space<vmem>>) attributes {dimension_semantics = [#tpu.dimension_semantics<parallel>, #tpu.dimension_semantics<parallel>, #tpu.dimension_semantics<arbitrary>], iteration_bounds = array<i64: 1, 1, 1>, scalar_prefetch = 0 : i64, scratch_operands = 1 : i64, tpu.core_type = #tpu.core_type<tc>, window_params = [{transform_indices = @transform_0, window_bounds = array<i64: 64, 128>}, {transform_indices = @transform_1, window_bounds = array<i64: 128, 128>}, {transform_indices = @transform_2, window_bounds = array<i64: 1, 128>}, {transform_indices = @transform_3, window_bounds = array<i64: 64, 128>}]} {
    %c0_i32 = arith.constant 0 : i32
    %0 = arith.cmpi eq, %arg2, %c0_i32 : i32
    %1 = arith.extui %0 : i1 to i32
    %c0_i32_0 = arith.constant 0 : i32
    %2 = arith.cmpi ne, %1, %c0_i32_0 : i32
    scf.if %2 {
      %cst_10 = arith.constant 0.000000e+00 : f32
      %12 = vector.broadcast %cst_10 : f32 to vector<64x128xf32>
      %c0_11 = arith.constant 0 : index
      %c0_12 = arith.constant 0 : index
      %13 = vector.load %arg7[%c0_11, %c0_12] : memref<64x128xf32, #tpu.memory_space<vmem>>, vector<64x128xf32>
      tpu.vector_store %arg7[%c0_11, %c0_12], %12 {strides = array<i32>} : memref<64x128xf32, #tpu.memory_space<vmem>>, vector<64x128xf32>,
    } else {
    }
    %c0 = arith.constant 0 : index
    %c0_1 = arith.constant 0 : index
    %3 = vector.load %arg7[%c0, %c0_1] : memref<64x128xf32, #tpu.memory_space<vmem>>, vector<64x128xf32>
    %c0_2 = arith.constant 0 : index
    %c0_3 = arith.constant 0 : index
    %4 = vector.load %arg3[%c0_2, %c0_3] : memref<64x128xbf16, #tpu.memory_space<vmem>>, vector<64x128xbf16>
    %c0_4 = arith.constant 0 : index
    %c0_5 = arith.constant 0 : index
    %5 = vector.load %arg4[%c0_4, %c0_5] : memref<128x128xbf16, #tpu.memory_space<vmem>>, vector<128x128xbf16>
    %cst = arith.constant dense<0.000000e+00> : vector<64x128xf32>
    %6 = tpu.matmul %4, %5, %cst {dimension_numbers = #tpu.dot_dimension_numbers<[1], [0], [0], [1], [0, 0, 1, 1], [], []>} : vector<64x128xbf16>, vector<128x128xbf16>, vector<64x128xf32> -> vector<64x128xf32>
    %7 = arith.addf %3, %6 : vector<64x128xf32>
    %c0_6 = arith.constant 0 : index
    %c0_7 = arith.constant 0 : index
    %8 = vector.load %arg7[%c0_6, %c0_7] : memref<64x128xf32, #tpu.memory_space<vmem>>, vector<64x128xf32>
    tpu.vector_store %arg7[%c0_6, %c0_7], %7 {strides = array<i32>} : memref<64x128xf32, #tpu.memory_space<vmem>>, vector<64x128xf32>,
    %c0_i32_8 = arith.constant 0 : i32
    %9 = arith.cmpi eq, %arg2, %c0_i32_8 : i32
    %10 = arith.extui %9 : i1 to i32
    %c0_i32_9 = arith.constant 0 : i32
    %11 = arith.cmpi ne, %10, %c0_i32_9 : i32
    scf.if %11 {
      %c0_10 = arith.constant 0 : index
      %c0_11 = arith.constant 0 : index
      %12 = vector.load %arg7[%c0_10, %c0_11] : memref<64x128xf32, #tpu.memory_space<vmem>>, vector<64x128xf32>
      %c0_12 = arith.constant 0 : index
      %c0_13 = arith.constant 0 : index
      %13 = vector.load %arg5[%c0_12, %c0_13] : memref<1x128xf32, #tpu.memory_space<vmem>>, vector<1x128xf32>
      %14 = vector.broadcast %13 : vector<1x128xf32> to vector<64x128xf32>
      %15 = arith.addf %12, %14 : vector<64x128xf32>
      %16 = arith.truncf %15 : vector<64x128xf32> to vector<64x128xbf16>
      %c0_14 = arith.constant 0 : index
      %c0_15 = arith.constant 0 : index
      %17 = vector.load %arg6[%c0_14, %c0_15] : memref<64x128xbf16, #tpu.memory_space<vmem>>, vector<64x128xbf16>
      tpu.vector_store %arg6[%c0_14, %c0_15], %16 {strides = array<i32>} : memref<64x128xbf16, #tpu.memory_space<vmem>>, vector<64x128xbf16>,
    } else {
    }
    return
  }
  func.func @transform_0(%arg0: i32, %arg1: i32, %arg2: i32) -> (i32, i32) {
    %c0_i32 = arith.constant 0 : i32
    return %arg0, %arg2 : i32, i32
  }
  func.func @transform_1(%arg0: i32, %arg1: i32, %arg2: i32) -> (i32, i32) {
    %c0_i32 = arith.constant 0 : i32
    return %arg2, %arg1 : i32, i32
  }
  func.func @transform_2(%arg0: i32, %arg1: i32, %arg2: i32) -> (i32, i32) {
    %c0_i32 = arith.constant 0 : i32
    %c0_i32_0 = arith.constant 0 : i32
    return %c0_i32, %arg1 : i32, i32
  }
  func.func @transform_3(%arg0: i32, %arg1: i32, %arg2: i32) -> (i32, i32) {
    %c0_i32 = arith.constant 0 : i32
    return %arg0, %arg1 : i32, i32
  }
}

module attributes {stable_mosaic.version = 11 : i64} {
  func.func @kernel(%arg0: i32, %arg1: i32, %arg2: i32, %arg3: memref<16x128xbf16, #tpu.memory_space<vmem>>, %arg4: memref<128x128xbf16, #tpu.memory_space<vmem>>, %arg5: memref<1x128xf32, #tpu.memory_space<vmem>>, %arg6: memref<1x128xf32, #tpu.memory_space<vmem>>, %arg7: memref<1x128xf32, #tpu.memory_space<vmem>>, %arg8: memref<16x128xbf16, #tpu.memory_space<vmem>>, %arg9: memref<16x128xf32, #tpu.memory_space<vmem>>) attributes {dimension_semantics = [#tpu.dimension_semantics<parallel>, #tpu.dimension_semantics<parallel>, #tpu.dimension_semantics<arbitrary>], iteration_bounds = array<i64: 1, 1, 1>, scalar_prefetch = 0 : i64, scratch_operands = 1 : i64, tpu.core_type = #tpu.core_type<tc>, window_params = [{transform_indices = @transform_0, window_bounds = array<i64: 16, 128>}, {transform_indices = @transform_1, window_bounds = array<i64: 128, 128>}, {transform_indices = @transform_2, window_bounds = array<i64: 1, 128>}, {transform_indices = @transform_3, window_bounds = array<i64: 1, 128>}, {transform_indices = @transform_4, window_bounds = array<i64: 1, 128>}, {transform_indices = @transform_5, window_bounds = array<i64: 16, 128>}]} {
    %c0_i32 = arith.constant 0 : i32
    %0 = arith.cmpi eq, %arg2, %c0_i32 : i32
    %1 = arith.extui %0 : i1 to i32
    %c0_i32_0 = arith.constant 0 : i32
    %2 = arith.cmpi ne, %1, %c0_i32_0 : i32
    scf.if %2 {
      %cst_10 = arith.constant 0.000000e+00 : f32
      %12 = vector.broadcast %cst_10 : f32 to vector<16x128xf32>
      %c0_11 = arith.constant 0 : index
      %c0_12 = arith.constant 0 : index
      %13 = vector.load %arg9[%c0_11, %c0_12] : memref<16x128xf32, #tpu.memory_space<vmem>>, vector<16x128xf32>
      tpu.vector_store %arg9[%c0_11, %c0_12], %12 {strides = array<i32>} : memref<16x128xf32, #tpu.memory_space<vmem>>, vector<16x128xf32>,
    } else {
    }
    %c0 = arith.constant 0 : index
    %c0_1 = arith.constant 0 : index
    %3 = vector.load %arg9[%c0, %c0_1] : memref<16x128xf32, #tpu.memory_space<vmem>>, vector<16x128xf32>
    %c0_2 = arith.constant 0 : index
    %c0_3 = arith.constant 0 : index
    %4 = vector.load %arg3[%c0_2, %c0_3] : memref<16x128xbf16, #tpu.memory_space<vmem>>, vector<16x128xbf16>
    %c0_4 = arith.constant 0 : index
    %c0_5 = arith.constant 0 : index
    %5 = vector.load %arg4[%c0_4, %c0_5] : memref<128x128xbf16, #tpu.memory_space<vmem>>, vector<128x128xbf16>
    %cst = arith.constant dense<0.000000e+00> : vector<16x128xf32>
    %6 = tpu.matmul %4, %5, %cst {dimension_numbers = #tpu.dot_dimension_numbers<[1], [0], [0], [1], [0, 0, 1, 1], [], []>} : vector<16x128xbf16>, vector<128x128xbf16>, vector<16x128xf32> -> vector<16x128xf32>
    %7 = arith.addf %3, %6 : vector<16x128xf32>
    %c0_6 = arith.constant 0 : index
    %c0_7 = arith.constant 0 : index
    %8 = vector.load %arg9[%c0_6, %c0_7] : memref<16x128xf32, #tpu.memory_space<vmem>>, vector<16x128xf32>
    tpu.vector_store %arg9[%c0_6, %c0_7], %7 {strides = array<i32>} : memref<16x128xf32, #tpu.memory_space<vmem>>, vector<16x128xf32>,
    %c0_i32_8 = arith.constant 0 : i32
    %9 = arith.cmpi eq, %arg2, %c0_i32_8 : i32
    %10 = arith.extui %9 : i1 to i32
    %c0_i32_9 = arith.constant 0 : i32
    %11 = arith.cmpi ne, %10, %c0_i32_9 : i32
    scf.if %11 {
      %c0_10 = arith.constant 0 : index
      %c0_11 = arith.constant 0 : index
      %12 = vector.load %arg9[%c0_10, %c0_11] : memref<16x128xf32, #tpu.memory_space<vmem>>, vector<16x128xf32>
      %c0_12 = arith.constant 0 : index
      %c0_13 = arith.constant 0 : index
      %13 = vector.load %arg5[%c0_12, %c0_13] : memref<1x128xf32, #tpu.memory_space<vmem>>, vector<1x128xf32>
      %14 = vector.broadcast %13 : vector<1x128xf32> to vector<16x128xf32>
      %15 = arith.addf %12, %14 : vector<16x128xf32>
      %16 = tpu.iota {dimensions = array<i32: 0>} : vector<16x1xi32>
      %cst_14 = arith.constant 0.000000e+00 : f32
      %17 = vector.broadcast %cst_14 : f32 to vector<16x128xf32>
      %c0_i32_15 = arith.constant 0 : i32
      %18 = vector.broadcast %c0_i32_15 : i32 to vector<16x1xi32>
      %19 = arith.cmpi sge, %16, %18 : vector<16x1xi32>
      %c2_i32 = arith.constant 2 : i32
      %20 = vector.broadcast %c2_i32 : i32 to vector<16x1xi32>
      %21 = arith.cmpi slt, %16, %20 : vector<16x1xi32>
      %22 = arith.andi %19, %21 : vector<16x1xi1>
      %cst_16 = arith.constant 0.000000e+00 : f32
      %23 = vector.shape_cast %22 : vector<16x1xi1> to vector<16x1xi1>
      %24 = vector.broadcast %23 : vector<16x1xi1> to vector<16x128xi1>
      %25 = vector.broadcast %cst_16 : f32 to vector<16x128xf32>
      %26 = arith.select %24, %15, %25 : vector<16x128xi1>, vector<16x128xf32>
      %cst_17 = arith.constant dense<0.000000e+00> : vector<128xf32>
      %27 = vector.multi_reduction <add>, %26, %cst_17 [0] : vector<16x128xf32> to vector<128xf32>
      %28 = vector.shape_cast %27 : vector<128xf32> to vector<1x128xf32>
      %cst_18 = arith.constant 2.000000e+00 : f32
      %29 = vector.broadcast %cst_18 : f32 to vector<1x128xf32>
      %30 = arith.divf %28, %29 : vector<1x128xf32>
      %31 = vector.broadcast %30 : vector<1x128xf32> to vector<16x128xf32>
      %32 = arith.subf %15, %31 : vector<16x128xf32>
      %33 = arith.mulf %32, %32 : vector<16x128xf32>
      %cst_19 = arith.constant 0.000000e+00 : f32
      %34 = vector.shape_cast %22 : vector<16x1xi1> to vector<16x1xi1>
      %35 = vector.broadcast %34 : vector<16x1xi1> to vector<16x128xi1>
      %36 = vector.broadcast %cst_19 : f32 to vector<16x128xf32>
      %37 = arith.select %35, %33, %36 : vector<16x128xi1>, vector<16x128xf32>
      %cst_20 = arith.constant dense<0.000000e+00> : vector<128xf32>
      %38 = vector.multi_reduction <add>, %37, %cst_20 [0] : vector<16x128xf32> to vector<128xf32>
      %39 = vector.shape_cast %38 : vector<128xf32> to vector<1x128xf32>
      %cst_21 = arith.constant 2.000000e+00 : f32
      %40 = vector.broadcast %cst_21 : f32 to vector<1x128xf32>
      %41 = arith.divf %39, %40 : vector<1x128xf32>
      %42 = vector.broadcast %30 : vector<1x128xf32> to vector<16x128xf32>
      %43 = arith.subf %15, %42 : vector<16x128xf32>
      %cst_22 = arith.constant 9.99999974E-6 : f32
      %44 = vector.broadcast %cst_22 : f32 to vector<1x128xf32>
      %45 = arith.addf %41, %44 : vector<1x128xf32>
      %46 = math.rsqrt %45 : vector<1x128xf32>
      %47 = vector.broadcast %46 : vector<1x128xf32> to vector<16x128xf32>
      %48 = arith.mulf %43, %47 : vector<16x128xf32>
      %49 = vector.shape_cast %22 : vector<16x1xi1> to vector<16x1xi1>
      %50 = vector.broadcast %49 : vector<16x1xi1> to vector<16x128xi1>
      %51 = arith.select %50, %48, %17 : vector<16x128xi1>, vector<16x128xf32>
      %c2_i32_23 = arith.constant 2 : i32
      %52 = vector.broadcast %c2_i32_23 : i32 to vector<16x1xi32>
      %53 = arith.cmpi sge, %16, %52 : vector<16x1xi32>
      %c4_i32 = arith.constant 4 : i32
      %54 = vector.broadcast %c4_i32 : i32 to vector<16x1xi32>
      %55 = arith.cmpi slt, %16, %54 : vector<16x1xi32>
      %56 = arith.andi %53, %55 : vector<16x1xi1>
      %cst_24 = arith.constant 0.000000e+00 : f32
      %57 = vector.shape_cast %56 : vector<16x1xi1> to vector<16x1xi1>
      %58 = vector.broadcast %57 : vector<16x1xi1> to vector<16x128xi1>
      %59 = vector.broadcast %cst_24 : f32 to vector<16x128xf32>
      %60 = arith.select %58, %15, %59 : vector<16x128xi1>, vector<16x128xf32>
      %cst_25 = arith.constant dense<0.000000e+00> : vector<128xf32>
      %61 = vector.multi_reduction <add>, %60, %cst_25 [0] : vector<16x128xf32> to vector<128xf32>
      %62 = vector.shape_cast %61 : vector<128xf32> to vector<1x128xf32>
      %cst_26 = arith.constant 2.000000e+00 : f32
      %63 = vector.broadcast %cst_26 : f32 to vector<1x128xf32>
      %64 = arith.divf %62, %63 : vector<1x128xf32>
      %65 = vector.broadcast %64 : vector<1x128xf32> to vector<16x128xf32>
      %66 = arith.subf %15, %65 : vector<16x128xf32>
      %67 = arith.mulf %66, %66 : vector<16x128xf32>
      %cst_27 = arith.constant 0.000000e+00 : f32
      %68 = vector.shape_cast %56 : vector<16x1xi1> to vector<16x1xi1>
      %69 = vector.broadcast %68 : vector<16x1xi1> to vector<16x128xi1>
      %70 = vector.broadcast %cst_27 : f32 to vector<16x128xf32>
      %71 = arith.select %69, %67, %70 : vector<16x128xi1>, vector<16x128xf32>
      %cst_28 = arith.constant dense<0.000000e+00> : vector<128xf32>
      %72 = vector.multi_reduction <add>, %71, %cst_28 [0] : vector<16x128xf32> to vector<128xf32>
      %73 = vector.shape_cast %72 : vector<128xf32> to vector<1x128xf32>
      %cst_29 = arith.constant 2.000000e+00 : f32
      %74 = vector.broadcast %cst_29 : f32 to vector<1x128xf32>
      %75 = arith.divf %73, %74 : vector<1x128xf32>
      %76 = vector.broadcast %64 : vector<1x128xf32> to vector<16x128xf32>
      %77 = arith.subf %15, %76 : vector<16x128xf32>
      %cst_30 = arith.constant 9.99999974E-6 : f32
      %78 = vector.broadcast %cst_30 : f32 to vector<1x128xf32>
      %79 = arith.addf %75, %78 : vector<1x128xf32>
      %80 = math.rsqrt %79 : vector<1x128xf32>
      %81 = vector.broadcast %80 : vector<1x128xf32> to vector<16x128xf32>
      %82 = arith.mulf %77, %81 : vector<16x128xf32>
      %83 = vector.shape_cast %56 : vector<16x1xi1> to vector<16x1xi1>
      %84 = vector.broadcast %83 : vector<16x1xi1> to vector<16x128xi1>
      %85 = arith.select %84, %82, %51 : vector<16x128xi1>, vector<16x128xf32>
      %c0_31 = arith.constant 0 : index
      %c0_32 = arith.constant 0 : index
      %86 = vector.load %arg6[%c0_31, %c0_32] : memref<1x128xf32, #tpu.memory_space<vmem>>, vector<1x128xf32>
      %87 = vector.broadcast %86 : vector<1x128xf32> to vector<16x128xf32>
      %88 = arith.mulf %85, %87 : vector<16x128xf32>
      %c0_33 = arith.constant 0 : index
      %c0_34 = arith.constant 0 : index
      %89 = vector.load %arg7[%c0_33, %c0_34] : memref<1x128xf32, #tpu.memory_space<vmem>>, vector<1x128xf32>
      %90 = vector.broadcast %89 : vector<1x128xf32> to vector<16x128xf32>
      %91 = arith.addf %88, %90 : vector<16x128xf32>
      %cst_35 = arith.constant 0.000000e+00 : f32
      %92 = vector.broadcast %cst_35 : f32 to vector<16x128xf32>
      %93 = arith.maximumf %91, %92 : vector<16x128xf32>
      %94 = arith.truncf %93 : vector<16x128xf32> to vector<16x128xbf16>
      %c0_36 = arith.constant 0 : index
      %c0_37 = arith.constant 0 : index
      %95 = vector.load %arg8[%c0_36, %c0_37] : memref<16x128xbf16, #tpu.memory_space<vmem>>, vector<16x128xbf16>
      tpu.vector_store %arg8[%c0_36, %c0_37], %94 {strides = array<i32>} : memref<16x128xbf16, #tpu.memory_space<vmem>>, vector<16x128xbf16>,
    } else {
    }
    return
  }
  func.func @transform_0(%arg0: i32, %arg1: i32, %arg2: i32) -> (i32, i32) {
    %c0_i32 = arith.constant 0 : i32
    return %arg0, %arg2 : i32, i32
  }
  func.func @transform_1(%arg0: i32, %arg1: i32, %arg2: i32) -> (i32, i32) {
    %c0_i32 = arith.constant 0 : i32
    return %arg2, %arg1 : i32, i32
  }
  func.func @transform_2(%arg0: i32, %arg1: i32, %arg2: i32) -> (i32, i32) {
    %c0_i32 = arith.constant 0 : i32
    %c0_i32_0 = arith.constant 0 : i32
    return %c0_i32, %arg1 : i32, i32
  }
  func.func @transform_3(%arg0: i32, %arg1: i32, %arg2: i32) -> (i32, i32) {
    %c0_i32 = arith.constant 0 : i32
    %c0_i32_0 = arith.constant 0 : i32
    return %c0_i32, %arg1 : i32, i32
  }
  func.func @transform_4(%arg0: i32, %arg1: i32, %arg2: i32) -> (i32, i32) {
    %c0_i32 = arith.constant 0 : i32
    %c0_i32_0 = arith.constant 0 : i32
    return %c0_i32, %arg1 : i32, i32
  }
  func.func @transform_5(%arg0: i32, %arg1: i32, %arg2: i32) -> (i32, i32) {
    %c0_i32 = arith.constant 0 : i32
    return %arg0, %arg1 : i32, i32
  }
}

module attributes {stable_mosaic.version = 11 : i64} {
  func.func @_linear_kernel(%arg0: i32, %arg1: i32, %arg2: i32, %arg3: memref<16x128xbf16, #tpu.memory_space<vmem>>, %arg4: memref<128x128xbf16, #tpu.memory_space<vmem>>, %arg5: memref<1x128xf32, #tpu.memory_space<vmem>>, %arg6: memref<16x128xf32, #tpu.memory_space<vmem>>, %arg7: memref<16x128xf32, #tpu.memory_space<vmem>>) attributes {dimension_semantics = [#tpu.dimension_semantics<parallel>, #tpu.dimension_semantics<parallel>, #tpu.dimension_semantics<arbitrary>], iteration_bounds = array<i64: 1, 1, 1>, scalar_prefetch = 0 : i64, scratch_operands = 1 : i64, tpu.core_type = #tpu.core_type<tc>, window_params = [{transform_indices = @transform_0, window_bounds = array<i64: 16, 128>}, {transform_indices = @transform_1, window_bounds = array<i64: 128, 128>}, {transform_indices = @transform_2, window_bounds = array<i64: 1, 128>}, {transform_indices = @transform_3, window_bounds = array<i64: 16, 128>}]} {
    %c0_i32 = arith.constant 0 : i32
    %0 = arith.cmpi eq, %arg2, %c0_i32 : i32
    %1 = arith.extui %0 : i1 to i32
    %c0_i32_0 = arith.constant 0 : i32
    %2 = arith.cmpi ne, %1, %c0_i32_0 : i32
    scf.if %2 {
      %cst_10 = arith.constant 0.000000e+00 : f32
      %12 = vector.broadcast %cst_10 : f32 to vector<16x128xf32>
      %c0_11 = arith.constant 0 : index
      %c0_12 = arith.constant 0 : index
      %13 = vector.load %arg7[%c0_11, %c0_12] : memref<16x128xf32, #tpu.memory_space<vmem>>, vector<16x128xf32>
      tpu.vector_store %arg7[%c0_11, %c0_12], %12 {strides = array<i32>} : memref<16x128xf32, #tpu.memory_space<vmem>>, vector<16x128xf32>,
    } else {
    }
    %c0 = arith.constant 0 : index
    %c0_1 = arith.constant 0 : index
    %3 = vector.load %arg7[%c0, %c0_1] : memref<16x128xf32, #tpu.memory_space<vmem>>, vector<16x128xf32>
    %c0_2 = arith.constant 0 : index
    %c0_3 = arith.constant 0 : index
    %4 = vector.load %arg3[%c0_2, %c0_3] : memref<16x128xbf16, #tpu.memory_space<vmem>>, vector<16x128xbf16>
    %c0_4 = arith.constant 0 : index
    %c0_5 = arith.constant 0 : index
    %5 = vector.load %arg4[%c0_4, %c0_5] : memref<128x128xbf16, #tpu.memory_space<vmem>>, vector<128x128xbf16>
    %cst = arith.constant dense<0.000000e+00> : vector<16x128xf32>
    %6 = tpu.matmul %4, %5, %cst {dimension_numbers = #tpu.dot_dimension_numbers<[1], [0], [0], [1], [0, 0, 1, 1], [], []>} : vector<16x128xbf16>, vector<128x128xbf16>, vector<16x128xf32> -> vector<16x128xf32>
    %7 = arith.addf %3, %6 : vector<16x128xf32>
    %c0_6 = arith.constant 0 : index
    %c0_7 = arith.constant 0 : index
    %8 = vector.load %arg7[%c0_6, %c0_7] : memref<16x128xf32, #tpu.memory_space<vmem>>, vector<16x128xf32>
    tpu.vector_store %arg7[%c0_6, %c0_7], %7 {strides = array<i32>} : memref<16x128xf32, #tpu.memory_space<vmem>>, vector<16x128xf32>,
    %c0_i32_8 = arith.constant 0 : i32
    %9 = arith.cmpi eq, %arg2, %c0_i32_8 : i32
    %10 = arith.extui %9 : i1 to i32
    %c0_i32_9 = arith.constant 0 : i32
    %11 = arith.cmpi ne, %10, %c0_i32_9 : i32
    scf.if %11 {
      %c0_10 = arith.constant 0 : index
      %c0_11 = arith.constant 0 : index
      %12 = vector.load %arg7[%c0_10, %c0_11] : memref<16x128xf32, #tpu.memory_space<vmem>>, vector<16x128xf32>
      %c0_12 = arith.constant 0 : index
      %c0_13 = arith.constant 0 : index
      %13 = vector.load %arg5[%c0_12, %c0_13] : memref<1x128xf32, #tpu.memory_space<vmem>>, vector<1x128xf32>
      %14 = vector.broadcast %13 : vector<1x128xf32> to vector<16x128xf32>
      %15 = arith.addf %12, %14 : vector<16x128xf32>
      %c0_14 = arith.constant 0 : index
      %c0_15 = arith.constant 0 : index
      %16 = vector.load %arg6[%c0_14, %c0_15] : memref<16x128xf32, #tpu.memory_space<vmem>>, vector<16x128xf32>
      tpu.vector_store %arg6[%c0_14, %c0_15], %15 {strides = array<i32>} : memref<16x128xf32, #tpu.memory_space<vmem>>, vector<16x128xf32>,
    } else {
    }
    return
  }
  func.func @transform_0(%arg0: i32, %arg1: i32, %arg2: i32) -> (i32, i32) {
    %c0_i32 = arith.constant 0 : i32
    return %arg0, %arg2 : i32, i32
  }
  func.func @transform_1(%arg0: i32, %arg1: i32, %arg2: i32) -> (i32, i32) {
    %c0_i32 = arith.constant 0 : i32
    return %arg2, %arg1 : i32, i32
  }
  func.func @transform_2(%arg0: i32, %arg1: i32, %arg2: i32) -> (i32, i32) {
    %c0_i32 = arith.constant 0 : i32
    %c0_i32_0 = arith.constant 0 : i32
    return %c0_i32, %arg1 : i32, i32
  }
  func.func @transform_3(%arg0: i32, %arg1: i32, %arg2: i32) -> (i32, i32) {
    %c0_i32 = arith.constant 0 : i32
    return %arg0, %arg1 : i32, i32
  }
}

</mosaic_0001>

<llo_original>
// kernel: byol_forward.13
$region0: #{byol_forward.13}
  #allocation0 [shape = 'u32[]', space=smem, size = 0x4, offset = 0x4, fixed_abs, tag = 'smem constant byte address 0x4 - core index']
  #allocation1 [shape = 'u32[144,128]{1,0:T(1,128)}', space=vmem, size = 0x12000, scoped, tag = 'internal scratch']
  #allocation2 [shape = 'f32[64,128]{1,0:T(8,128)}', space=vmem, size = 0x8000, scoped, tag = 'scratch operand']
  %s0 = inlined_call_operand.vmem [shape: bf16[64,128], index: 0, kind: input, shape index: {}]
  %s1 = inlined_call_operand.vmem [shape: bf16[128,128], index: 1, kind: input, shape index: {}]
  %s2 = inlined_call_operand.vmem [shape: f32[1,128], index: 2, kind: input, shape index: {}]
  %s3 = inlined_call_operand.vmem [shape: bf16[64,128], index: 3, kind: output, shape index: {}]
  %s4 = sld [smem:[#allocation0]]
  $region30: #{byol_forward.13} parent=0
    _
  %s6 = ssub.s32 1, %s4
  %s7 = scalar_select 0, %s6, %s4
  // Predicated region
  $region2: #{byol_forward.13} parent=0 // pred_check
    _
  $region3: #{byol_forward.13} parent=0 // pred_check_branch
    %9 = sbr.rel (0) target = $region5
  $region4: #{byol_forward.13} parent=0 // pred_region
    _
  $region5: #{byol_forward.13} parent=0 // pred_fallthru
    _
  // Predicated region
  $region6: #{byol_forward.13} parent=0 // pred_check
    _
  $region7: #{byol_forward.13} parent=0 // pred_check_branch
    %11 = sbr.rel (0) target = $region9
  $region8: #{byol_forward.13} parent=0 // pred_region
    _
  $region9: #{byol_forward.13} parent=0 // pred_fallthru
    _
  // Predicated region
  $region10: #{byol_forward.13} parent=0 // pred_check
    _
  $region11: #{byol_forward.13} parent=0 // pred_check_branch
    %13 = sbr.rel (0) target = $region13
  $region12: #{byol_forward.13} parent=0 // pred_region
    _
  $region13: #{byol_forward.13} parent=0 // pred_fallthru
    _
  %p15 = scmp.eq.s32.totalorder 0, 0
  // Predicated region
  $region14: #{byol_forward.13} parent=0 // pred_check
    %p16 = pneg %p15
  $region15: #{byol_forward.13} parent=0 // pred_check_branch
    %18 = sbr.rel (%p16) target = $region17
  $region16: #{byol_forward.13} parent=0 // pred_region
    %19 = vst [vmem:[#allocation2] sm:$0xff] 0.0
    %20 = vst [vmem:[#allocation2 + $0x8] sm:$0xff] 0.0
    %21 = vst [vmem:[#allocation2 + $0x10] sm:$0xff] 0.0
    %22 = vst [vmem:[#allocation2 + $0x18] sm:$0xff] 0.0
    %23 = vst [vmem:[#allocation2 + $0x20] sm:$0xff] 0.0
    %24 = vst [vmem:[#allocation2 + $0x28] sm:$0xff] 0.0
    %25 = vst [vmem:[#allocation2 + $0x30] sm:$0xff] 0.0
    %26 = vst [vmem:[#allocation2 + $0x38] sm:$0xff] 0.0
  $region17: #{byol_forward.13} parent=0 // pred_fallthru
    _
  %v27 = vld [vmem:[#allocation2] sm:$0xff]
  %v28 = vld [vmem:[#allocation2 + $0x8] sm:$0xff]
  %v29 = vld [vmem:[#allocation2 + $0x10] sm:$0xff]
  %v30 = vld [vmem:[#allocation2 + $0x18] sm:$0xff]
  %v31 = vld [vmem:[#allocation2 + $0x20] sm:$0xff]
  %v32 = vld [vmem:[#allocation2 + $0x28] sm:$0xff]
  %v33 = vld [vmem:[#allocation2 + $0x30] sm:$0xff]
  %v34 = vld [vmem:[#allocation2 + $0x38] sm:$0xff]
  %v35 = vld [vmem:[%s0] sm:$0xf]
  %v36 = vld [vmem:[%s0 + $0x4] sm:$0xf]
  %v37 = vld [vmem:[%s0 + $0x8] sm:$0xf]
  %v38 = vld [vmem:[%s0 + $0xc] sm:$0xf]
  %v39 = vld [vmem:[%s0 + $0x10] sm:$0xf]
  %v40 = vld [vmem:[%s0 + $0x14] sm:$0xf]
  %v41 = vld [vmem:[%s0 + $0x18] sm:$0xf]
  %v42 = vld [vmem:[%s0 + $0x1c] sm:$0xf]
  %v43 = vld [vmem:[%s1] sm:$0xf]
  %v44 = vld [vmem:[%s1 + $0x4] sm:$0xf]
  %v45 = vld [vmem:[%s1 + $0x8] sm:$0xf]
  %v46 = vld [vmem:[%s1 + $0xc] sm:$0xf]
  %v47 = vld [vmem:[%s1 + $0x10] sm:$0xf]
  %v48 = vld [vmem:[%s1 + $0x14] sm:$0xf]
  %v49 = vld [vmem:[%s1 + $0x18] sm:$0xf]
  %v50 = vld [vmem:[%s1 + $0x1c] sm:$0xf]
  %v51 = vld [vmem:[%s1 + $0x20] sm:$0xf]
  %v52 = vld [vmem:[%s1 + $0x24] sm:$0xf]
  %v53 = vld [vmem:[%s1 + $0x28] sm:$0xf]
  %v54 = vld [vmem:[%s1 + $0x2c] sm:$0xf]
  %v55 = vld [vmem:[%s1 + $0x30] sm:$0xf]
  %v56 = vld [vmem:[%s1 + $0x34] sm:$0xf]
  %v57 = vld [vmem:[%s1 + $0x38] sm:$0xf]
  %v58 = vld [vmem:[%s1 + $0x3c] sm:$0xf]
  %v67 = vunpack.c.l.b16 %v35
  %v68 = vunpack.c.l.b16 %v36
  %v69 = vunpack.c.l.b16 %v37
  %v70 = vunpack.c.l.b16 %v38
  %v71 = vunpack.c.l.b16 %v39
  %v72 = vunpack.c.l.b16 %v40
  %v73 = vunpack.c.l.b16 %v41
  %v74 = vunpack.c.l.b16 %v42
  %v75 = vpack.c.b16 %v68, %v67
  %v76 = vpack.c.b16 %v70, %v69
  %v77 = vpack.c.b16 %v72, %v71
  %v78 = vpack.c.b16 %v74, %v73
  %v99 = vunpack.c.l.b16 %v43
  %v100 = vunpack.c.l.b16 %v44
  %v101 = vunpack.c.l.b16 %v45
  %v102 = vunpack.c.l.b16 %v46
  %v103 = vunpack.c.l.b16 %v47
  %v104 = vunpack.c.l.b16 %v48
  %v105 = vunpack.c.l.b16 %v49
  %v106 = vunpack.c.l.b16 %v50
  %v107 = vunpack.c.l.b16 %v51
  %v108 = vunpack.c.l.b16 %v52
  %v109 = vunpack.c.l.b16 %v53
  %v110 = vunpack.c.l.b16 %v54
  %v111 = vunpack.c.l.b16 %v55
  %v112 = vunpack.c.l.b16 %v56
  %v113 = vunpack.c.l.b16 %v57
  %v114 = vunpack.c.l.b16 %v58
  %v115 = vpack.c.b16 %v100, %v99
  %v116 = vpack.c.b16 %v102, %v101
  %v117 = vpack.c.b16 %v104, %v103
  %v118 = vpack.c.b16 %v106, %v105
  %v119 = vpack.c.b16 %v108, %v107
  %v120 = vpack.c.b16 %v110, %v109
  %v121 = vpack.c.b16 %v112, %v111
  %v122 = vpack.c.b16 %v114, %v113
  %131 = vmatprep.subr.bf16.mxu0 0
  %132 = vmatpush1.bf16.msra.mxu0 %v115
  %133 = vmatprep.subr.bf16.mxu0 0
  %134 = vmatpush1.bf16.msra.mxu0 %v116
  %135 = vmatprep.subr.bf16.mxu0 0
  %136 = vmatpush1.bf16.msra.mxu0 %v117
  %137 = vmatprep.subr.bf16.mxu0 0
  %138 = vmatpush1.bf16.msra.mxu0 %v118
  %139 = vmatprep.subr.bf16.mxu0 0
  %140 = vmatpush1.bf16.msra.mxu0 %v119
  %141 = vmatprep.subr.bf16.mxu0 0
  %142 = vmatpush1.bf16.msra.mxu0 %v120
  %143 = vmatprep.subr.bf16.mxu0 0
  %144 = vmatpush1.bf16.msra.mxu0 %v121
  %145 = vmatprep.subr.bf16.mxu0 0
  %146 = vmatpush1.bf16.msra.mxu0 %v122
  %147 = vmatprep.subr.bf16.mxu0 0
  %148 = vmatpush1.bf16.msra.mxu0 0
  %149 = vmatprep.subr.bf16.mxu0 0
  %150 = vmatpush1.bf16.msra.mxu0 0
  %151 = vmatprep.subr.bf16.mxu0 0
  %152 = vmatpush1.bf16.msra.mxu0 0
  %153 = vmatprep.subr.bf16.mxu0 0
  %154 = vmatpush1.bf16.msra.mxu0 0
  %155 = vmatprep.subr.bf16.mxu0 0
  %156 = vmatpush1.bf16.msra.mxu0 0
  %157 = vmatprep.subr.bf16.mxu0 0
  %158 = vmatpush1.bf16.msra.mxu0 0
  %159 = vmatprep.subr.bf16.mxu0 0
  %160 = vmatpush1.bf16.msra.mxu0 0
  %161 = vmatprep.subr.bf16.mxu0 0
  %162 = vmatpush1.bf16.msra.mxu0 0
  %163 = vmatprep.mubr.bf16.mxu0 0
  %164 = vmatmul.mubr.bf16.gmra.mrb[0].mxu0 %v75
  %v165 = vpop.f32.mrb[0].mxu0
  %v166 = vadd.f32 0.0, %v165
  %v167 = vpop.f32.mrb[0].mxu0
  %v168 = vpop.f32.mrb[0].mxu0
  %v169 = vadd.f32 0.0, %v168
  %v170 = vpop.f32.mrb[0].mxu0
  %171 = vmatprep.mubr.bf16.mxu0 0
  %172 = vmatmul.mubr.bf16.gmra.mrb[0].mxu0 %v76
  %v173 = vpop.f32.mrb[0].mxu0
  %v174 = vadd.f32 0.0, %v173
  %v175 = vpop.f32.mrb[0].mxu0
  %v176 = vpop.f32.mrb[0].mxu0
  %v177 = vadd.f32 0.0, %v176
  %v178 = vpop.f32.mrb[0].mxu0
  %179 = vmatprep.mubr.bf16.mxu0 0
  %180 = vmatmul.mubr.bf16.gmra.mrb[0].mxu0 %v77
  %v181 = vpop.f32.mrb[0].mxu0
  %v182 = vadd.f32 0.0, %v181
  %v183 = vpop.f32.mrb[0].mxu0
  %v184 = vpop.f32.mrb[0].mxu0
  %v185 = vadd.f32 0.0, %v184
  %v186 = vpop.f32.mrb[0].mxu0
  %187 = vmatprep.mubr.bf16.mxu0 0
  %188 = vmatmul.mubr.bf16.gmra.mrb[0].mxu0 %v78
  %v189 = vpop.f32.mrb[0].mxu0
  %v190 = vadd.f32 0.0, %v189
  %v191 = vpop.f32.mrb[0].mxu0
  %v192 = vpop.f32.mrb[0].mxu0
  %v193 = vadd.f32 0.0, %v192
  %v194 = vpop.f32.mrb[0].mxu0
  %195 = vdwg.mxu0
  %v196 = vadd.f32 %v27, %v166
  %v197 = vadd.f32 %v28, %v169
  %v198 = vadd.f32 %v29, %v174
  %v199 = vadd.f32 %v30, %v177
  %v200 = vadd.f32 %v31, %v182
  %v201 = vadd.f32 %v32, %v185
  %v202 = vadd.f32 %v33, %v190
  %v203 = vadd.f32 %v34, %v193
  %204 = vst [vmem:[#allocation2] sm:$0xff] %v196
  %205 = vst [vmem:[#allocation2 + $0x8] sm:$0xff] %v197
  %206 = vst [vmem:[#allocation2 + $0x10] sm:$0xff] %v198
  %207 = vst [vmem:[#allocation2 + $0x18] sm:$0xff] %v199
  %208 = vst [vmem:[#allocation2 + $0x20] sm:$0xff] %v200
  %209 = vst [vmem:[#allocation2 + $0x28] sm:$0xff] %v201
  %210 = vst [vmem:[#allocation2 + $0x30] sm:$0xff] %v202
  %211 = vst [vmem:[#allocation2 + $0x38] sm:$0xff] %v203
  // Predicated region
  $region18: #{byol_forward.13} parent=0 // pred_check
    %p212 = pneg %p15
  $region19: #{byol_forward.13} parent=0 // pred_check_branch
    %214 = sbr.rel (%p212) target = $region21
  $region20: #{byol_forward.13} parent=0 // pred_region
    %v215 = vld [vmem:[#allocation2] sm:$0xff]
    %v216 = vld [vmem:[#allocation2 + $0x8] sm:$0xff]
    %v217 = vld [vmem:[#allocation2 + $0x10] sm:$0xff]
    %v218 = vld [vmem:[#allocation2 + $0x18] sm:$0xff]
    %v219 = vld [vmem:[#allocation2 + $0x20] sm:$0xff]
    %v220 = vld [vmem:[#allocation2 + $0x28] sm:$0xff]
    %v221 = vld [vmem:[#allocation2 + $0x30] sm:$0xff]
    %v222 = vld [vmem:[#allocation2 + $0x38] sm:$0xff]
    %v223 = vld [vmem:[%s2] sm:$0x1]
    %v225 = vlaneseq
    %v226 = vshrl.u32 %v225, 7
    %v227 = vsub.s32 0, %v226
    %v228 = vrot.slane %v223, %v227
    %v230 = vadd.f32 %v215, %v228
    %v231 = vadd.f32 %v216, %v228
    %v232 = vadd.f32 %v217, %v228
    %v233 = vadd.f32 %v218, %v228
    %v234 = vadd.f32 %v219, %v228
    %v235 = vadd.f32 %v220, %v228
    %v236 = vadd.f32 %v221, %v228
    %v237 = vadd.f32 %v222, %v228
    %v238 = vpack.c.bf16 %v231, %v230
    %v239 = vpack.c.bf16 %v233, %v232
    %v240 = vpack.c.bf16 %v235, %v234
    %v241 = vpack.c.bf16 %v237, %v236
    %v246 = vunpack.c.l.b16 %v238
    %v247 = vunpack.c.h.b16 %v238
    %v248 = vunpack.c.l.b16 %v239
    %v249 = vunpack.c.h.b16 %v239
    %v250 = vunpack.c.l.b16 %v240
    %v251 = vunpack.c.h.b16 %v240
    %v252 = vunpack.c.l.b16 %v241
    %v253 = vunpack.c.h.b16 %v241
    %v254 = vpack.c.b16 %v246, %v246
    %v255 = vpack.c.b16 %v247, %v247
    %v256 = vpack.c.b16 %v248, %v248
    %v257 = vpack.c.b16 %v249, %v249
    %v258 = vpack.c.b16 %v250, %v250
    %v259 = vpack.c.b16 %v251, %v251
    %v260 = vpack.c.b16 %v252, %v252
    %v261 = vpack.c.b16 %v253, %v253
    %270 = vst [vmem:[%s3] sm:$0xf] %v254
    %271 = vst [vmem:[%s3 + $0x4] sm:$0xf] %v255
    %272 = vst [vmem:[%s3 + $0x8] sm:$0xf] %v256
    %273 = vst [vmem:[%s3 + $0xc] sm:$0xf] %v257
    %274 = vst [vmem:[%s3 + $0x10] sm:$0xf] %v258
    %275 = vst [vmem:[%s3 + $0x14] sm:$0xf] %v259
    %276 = vst [vmem:[%s3 + $0x18] sm:$0xf] %v260
    %277 = vst [vmem:[%s3 + $0x1c] sm:$0xf] %v261
  $region21: #{byol_forward.13} parent=0 // pred_fallthru
    _
  // Predicated region
  $region22: #{byol_forward.13} parent=0 // pred_check
    _
  $region23: #{byol_forward.13} parent=0 // pred_check_branch
    %279 = sbr.rel (0) target = $region25
  $region24: #{byol_forward.13} parent=0 // pred_region
    _
  $region25: #{byol_forward.13} parent=0 // pred_fallthru
    _
  // Predicated region
  $region26: #{byol_forward.13} parent=0 // pred_check
    _
  $region27: #{byol_forward.13} parent=0 // pred_check_branch
    %281 = sbr.rel (0) target = $region29
  $region28: #{byol_forward.13} parent=0 // pred_region
    _
  $region29: #{byol_forward.13} parent=0 // pred_fallthru
    _

// kernel: byol_forward.14
$region0: #{byol_forward.14}
  #allocation0 [shape = 'u32[]', space=smem, size = 0x4, offset = 0x4, fixed_abs, tag = 'smem constant byte address 0x4 - core index']
  #allocation1 [shape = 'u32[144,128]{1,0:T(1,128)}', space=vmem, size = 0x12000, scoped, tag = 'internal scratch']
  #allocation2 [shape = 'f32[16,128]{1,0:T(8,128)}', space=vmem, size = 0x2000, scoped, tag = 'scratch operand']
  %s0 = inlined_call_operand.vmem [shape: bf16[16,128], index: 0, kind: input, shape index: {}]
  %s1 = inlined_call_operand.vmem [shape: bf16[128,128], index: 1, kind: input, shape index: {}]
  %s2 = inlined_call_operand.vmem [shape: f32[1,128], index: 2, kind: input, shape index: {}]
  %s3 = inlined_call_operand.vmem [shape: f32[1,128], index: 3, kind: input, shape index: {}]
  %s4 = inlined_call_operand.vmem [shape: f32[1,128], index: 4, kind: input, shape index: {}]
  %s5 = inlined_call_operand.vmem [shape: bf16[16,128], index: 5, kind: output, shape index: {}]
  %s6 = sld [smem:[#allocation0]]
  $region38: #{byol_forward.14} parent=0
    _
  %s8 = ssub.s32 1, %s6
  %s9 = scalar_select 0, %s8, %s6
  // Predicated region
  $region2: #{byol_forward.14} parent=0 // pred_check
    _
  $region3: #{byol_forward.14} parent=0 // pred_check_branch
    %11 = sbr.rel (0) target = $region5
  $region4: #{byol_forward.14} parent=0 // pred_region
    _
  $region5: #{byol_forward.14} parent=0 // pred_fallthru
    _
  // Predicated region
  $region6: #{byol_forward.14} parent=0 // pred_check
    _
  $region7: #{byol_forward.14} parent=0 // pred_check_branch
    %13 = sbr.rel (0) target = $region9
  $region8: #{byol_forward.14} parent=0 // pred_region
    _
  $region9: #{byol_forward.14} parent=0 // pred_fallthru
    _
  // Predicated region
  $region10: #{byol_forward.14} parent=0 // pred_check
    _
  $region11: #{byol_forward.14} parent=0 // pred_check_branch
    %15 = sbr.rel (0) target = $region13
  $region12: #{byol_forward.14} parent=0 // pred_region
    _
  $region13: #{byol_forward.14} parent=0 // pred_fallthru
    _
  // Predicated region
  $region14: #{byol_forward.14} parent=0 // pred_check
    _
  $region15: #{byol_forward.14} parent=0 // pred_check_branch
    %17 = sbr.rel (0) target = $region17
  $region16: #{byol_forward.14} parent=0 // pred_region
    _
  $region17: #{byol_forward.14} parent=0 // pred_fallthru
    _
  // Predicated region
  $region18: #{byol_forward.14} parent=0 // pred_check
    _
  $region19: #{byol_forward.14} parent=0 // pred_check_branch
    %19 = sbr.rel (0) target = $region21
  $region20: #{byol_forward.14} parent=0 // pred_region
    _
  $region21: #{byol_forward.14} parent=0 // pred_fallthru
    _
  %p21 = scmp.eq.s32.totalorder 0, 0
  // Predicated region
  $region22: #{byol_forward.14} parent=0 // pred_check
    %p22 = pneg %p21
  $region23: #{byol_forward.14} parent=0 // pred_check_branch
    %24 = sbr.rel (%p22) target = $region25
  $region24: #{byol_forward.14} parent=0 // pred_region
    %25 = vst [vmem:[#allocation2] sm:$0xff] 0.0
    %26 = vst [vmem:[#allocation2 + $0x8] sm:$0xff] 0.0
  $region25: #{byol_forward.14} parent=0 // pred_fallthru
    _
  %v27 = vld [vmem:[#allocation2] sm:$0xff]
  %v28 = vld [vmem:[#allocation2 + $0x8] sm:$0xff]
  %v29 = vld [vmem:[%s0] sm:$0xf]
  %v30 = vld [vmem:[%s0 + $0x4] sm:$0xf]
  %v31 = vld [vmem:[%s1] sm:$0xf]
  %v32 = vld [vmem:[%s1 + $0x4] sm:$0xf]
  %v33 = vld [vmem:[%s1 + $0x8] sm:$0xf]
  %v34 = vld [vmem:[%s1 + $0xc] sm:$0xf]
  %v35 = vld [vmem:[%s1 + $0x10] sm:$0xf]
  %v36 = vld [vmem:[%s1 + $0x14] sm:$0xf]
  %v37 = vld [vmem:[%s1 + $0x18] sm:$0xf]
  %v38 = vld [vmem:[%s1 + $0x1c] sm:$0xf]
  %v39 = vld [vmem:[%s1 + $0x20] sm:$0xf]
  %v40 = vld [vmem:[%s1 + $0x24] sm:$0xf]
  %v41 = vld [vmem:[%s1 + $0x28] sm:$0xf]
  %v42 = vld [vmem:[%s1 + $0x2c] sm:$0xf]
  %v43 = vld [vmem:[%s1 + $0x30] sm:$0xf]
  %v44 = vld [vmem:[%s1 + $0x34] sm:$0xf]
  %v45 = vld [vmem:[%s1 + $0x38] sm:$0xf]
  %v46 = vld [vmem:[%s1 + $0x3c] sm:$0xf]
  %v49 = vunpack.c.l.b16 %v29
  %v50 = vunpack.c.l.b16 %v30
  %v51 = vpack.c.b16 %v50, %v49
  %v69 = vunpack.c.l.b16 %v31
  %v70 = vunpack.c.l.b16 %v32
  %v71 = vunpack.c.l.b16 %v33
  %v72 = vunpack.c.l.b16 %v34
  %v73 = vunpack.c.l.b16 %v35
  %v74 = vunpack.c.l.b16 %v36
  %v75 = vunpack.c.l.b16 %v37
  %v76 = vunpack.c.l.b16 %v38
  %v77 = vunpack.c.l.b16 %v39
  %v78 = vunpack.c.l.b16 %v40
  %v79 = vunpack.c.l.b16 %v41
  %v80 = vunpack.c.l.b16 %v42
  %v81 = vunpack.c.l.b16 %v43
  %v82 = vunpack.c.l.b16 %v44
  %v83 = vunpack.c.l.b16 %v45
  %v84 = vunpack.c.l.b16 %v46
  %v85 = vpack.c.b16 %v70, %v69
  %v86 = vpack.c.b16 %v72, %v71
  %v87 = vpack.c.b16 %v74, %v73
  %v88 = vpack.c.b16 %v76, %v75
  %v89 = vpack.c.b16 %v78, %v77
  %v90 = vpack.c.b16 %v80, %v79
  %v91 = vpack.c.b16 %v82, %v81
  %v92 = vpack.c.b16 %v84, %v83
  %101 = vmatprep.subr.bf16.mxu0 0
  %102 = vmatpush1.bf16.msra.mxu0 %v85
  %103 = vmatprep.subr.bf16.mxu0 0
  %104 = vmatpush1.bf16.msra.mxu0 %v86
  %105 = vmatprep.subr.bf16.mxu0 0
  %106 = vmatpush1.bf16.msra.mxu0 %v87
  %107 = vmatprep.subr.bf16.mxu0 0
  %108 = vmatpush1.bf16.msra.mxu0 %v88
  %109 = vmatprep.subr.bf16.mxu0 0
  %110 = vmatpush1.bf16.msra.mxu0 %v89
  %111 = vmatprep.subr.bf16.mxu0 0
  %112 = vmatpush1.bf16.msra.mxu0 %v90
  %113 = vmatprep.subr.bf16.mxu0 0
  %114 = vmatpush1.bf16.msra.mxu0 %v91
  %115 = vmatprep.subr.bf16.mxu0 0
  %116 = vmatpush1.bf16.msra.mxu0 %v92
  %117 = vmatprep.subr.bf16.mxu0 0
  %118 = vmatpush1.bf16.msra.mxu0 0
  %119 = vmatprep.subr.bf16.mxu0 0
  %120 = vmatpush1.bf16.msra.mxu0 0
  %121 = vmatprep.subr.bf16.mxu0 0
  %122 = vmatpush1.bf16.msra.mxu0 0
  %123 = vmatprep.subr.bf16.mxu0 0
  %124 = vmatpush1.bf16.msra.mxu0 0
  %125 = vmatprep.subr.bf16.mxu0 0
  %126 = vmatpush1.bf16.msra.mxu0 0
  %127 = vmatprep.subr.bf16.mxu0 0
  %128 = vmatpush1.bf16.msra.mxu0 0
  %129 = vmatprep.subr.bf16.mxu0 0
  %130 = vmatpush1.bf16.msra.mxu0 0
  %131 = vmatprep.subr.bf16.mxu0 0
  %132 = vmatpush1.bf16.msra.mxu0 0
  %133 = vmatprep.mubr.bf16.mxu0 0
  %134 = vmatmul.mubr.bf16.gmra.mrb[0].mxu0 %v51
  %v135 = vpop.f32.mrb[0].mxu0
  %v136 = vadd.f32 0.0, %v135
  %v137 = vpop.f32.mrb[0].mxu0
  %v138 = vpop.f32.mrb[0].mxu0
  %v139 = vadd.f32 0.0, %v138
  %v140 = vpop.f32.mrb[0].mxu0
  %141 = vdwg.mxu0
  %v142 = vadd.f32 %v27, %v136
  %v143 = vadd.f32 %v28, %v139
  %144 = vst [vmem:[#allocation2] sm:$0xff] %v142
  %145 = vst [vmem:[#allocation2 + $0x8] sm:$0xff] %v143
  // Predicated region
  $region26: #{byol_forward.14} parent=0 // pred_check
    %p146 = pneg %p21
  $region27: #{byol_forward.14} parent=0 // pred_check_branch
    %148 = sbr.rel (%p146) target = $region29
  $region28: #{byol_forward.14} parent=0 // pred_region
    %v149 = vld [vmem:[#allocation2] sm:$0xff]
    %v150 = vld [vmem:[#allocation2 + $0x8] sm:$0xff]
    %v151 = vld [vmem:[%s2] sm:$0x1]
    %v153 = vlaneseq
    %v154 = vshrl.u32 %v153, 7
    %v155 = vsub.s32 0, %v154
    %v156 = vrot.slane %v151, %v155
    %v158 = vadd.f32 %v149, %v156
    %v159 = vadd.f32 %v150, %v156
    %v160 = vlaneseq
    %v161 = vshrl.u32 %v160, 7
    %v162 = vadd.s32 %v161, 8
    %vm163 = vcmp.ge.s32.totalorder %v161, 0
    %vm164 = vcmp.ge.s32.totalorder %v162, 0
    %vm165 = vcmp.lt.s32.totalorder %v161, 2
    %vm166 = vcmp.lt.s32.totalorder %v162, 2
    %vm167 = vmand %vm163, %vm165
    %vm168 = vmand %vm164, %vm166
    %v169 = vsel %vm167, 1, 0
    %v170 = vsel %vm168, 1, 0
    %vm171 = vcmp.eq.s32.totalorder %v169, 1
    %vm172 = vcmp.eq.s32.totalorder %v170, 1
    %v173 = vsel %vm171, %v158, 0.0
    %v174 = vsel %vm172, %v159, 0.0
    %v175 = vadd.f32 %v173, %v174
    %v176 = vrot.slane %v175, 4
    %v177 = vadd.f32 %v175, %v176
    %v178 = vrot.slane %v177, 2
    %v179 = vadd.f32 %v177, %v178
    %v180 = vrot.slane %v179, 1
    %v181 = vadd.f32 %v179, %v180
    %v182 = vrcp.pop 2.0
    %v183 = vmul.f32 %v181, %v182
    %v184 = vsub.f32 %v158, %v183
    %v185 = vsub.f32 %v159, %v183
    %v186 = vmul.f32 %v184, %v184
    %v187 = vmul.f32 %v185, %v185
    %v188 = vsel %vm171, %v186, 0.0
    %v189 = vsel %vm172, %v187, 0.0
    %v190 = vadd.f32 %v188, %v189
    %v191 = vrot.slane %v190, 4
    %v192 = vadd.f32 %v190, %v191
    %v193 = vrot.slane %v192, 2
    %v194 = vadd.f32 %v192, %v193
    %v195 = vrot.slane %v194, 1
    %v196 = vadd.f32 %v194, %v195
    %v197 = vmul.f32 %v196, %v182
    %v198 = vadd.f32 %v197, 1e-05
    %v199 = vrsqrt.pop %v198
    %v200 = vmul.f32 %v184, %v199
    %v201 = vmul.f32 %v185, %v199
    %v202 = vsel %vm171, %v200, 0.0
    %v203 = vsel %vm172, %v201, 0.0
    %vm204 = vcmp.ge.s32.totalorder %v161, 2
    %vm205 = vcmp.ge.s32.totalorder %v162, 2
    %vm206 = vcmp.lt.s32.totalorder %v161, 4
    %vm207 = vcmp.lt.s32.totalorder %v162, 4
    %vm208 = vmand %vm204, %vm206
    %vm209 = vmand %vm205, %vm207
    %v210 = vsel %vm208, 1, 0
    %v211 = vsel %vm209, 1, 0
    %vm212 = vcmp.eq.s32.totalorder %v210, 1
    %vm213 = vcmp.eq.s32.totalorder %v211, 1
    %v214 = vsel %vm212, %v158, 0.0
    %v215 = vsel %vm213, %v159, 0.0
    %v216 = vadd.f32 %v214, %v215
    %v217 = vrot.slane %v216, 4
    %v218 = vadd.f32 %v216, %v217
    %v219 = vrot.slane %v218, 2
    %v220 = vadd.f32 %v218, %v219
    %v221 = vrot.slane %v220, 1
    %v222 = vadd.f32 %v220, %v221
    %v223 = vmul.f32 %v222, %v182
    %v224 = vsub.f32 %v158, %v223
    %v225 = vsub.f32 %v159, %v223
    %v226 = vmul.f32 %v224, %v224
    %v227 = vmul.f32 %v225, %v225
    %v228 = vsel %vm212, %v226, 0.0
    %v229 = vsel %vm213, %v227, 0.0
    %v230 = vadd.f32 %v228, %v229
    %v231 = vrot.slane %v230, 4
    %v232 = vadd.f32 %v230, %v231
    %v233 = vrot.slane %v232, 2
    %v234 = vadd.f32 %v232, %v233
    %v235 = vrot.slane %v234, 1
    %v236 = vadd.f32 %v234, %v235
    %v237 = vmul.f32 %v236, %v182
    %v238 = vadd.f32 %v237, 1e-05
    %v239 = vrsqrt.pop %v238
    %v240 = vmul.f32 %v224, %v239
    %v241 = vmul.f32 %v225, %v239
    %v242 = vsel %vm212, %v240, %v202
    %v243 = vsel %vm213, %v241, %v203
    %v244 = vld [vmem:[%s3] sm:$0x1]
    %v246 = vlaneseq
    %v247 = vshrl.u32 %v246, 7
    %v248 = vsub.s32 0, %v247
    %v249 = vrot.slane %v244, %v248
    %v251 = vmul.f32 %v242, %v249
    %v252 = vmul.f32 %v243, %v249
    %v253 = vld [vmem:[%s4] sm:$0x1]
    %v255 = vlaneseq
    %v256 = vshrl.u32 %v255, 7
    %v257 = vsub.s32 0, %v256
    %v258 = vrot.slane %v253, %v257
    %v260 = vadd.f32 %v251, %v258
    %v261 = vadd.f32 %v252, %v258
    %v262 = vmax.f32 %v260, 0.0
    %v263 = vmax.f32 %v261, 0.0
    %v264 = vpack.c.bf16 %v263, %v262
    %v266 = vunpack.c.l.b16 %v264
    %v267 = vunpack.c.h.b16 %v264
    %v268 = vpack.c.b16 %v266, %v266
    %v269 = vpack.c.b16 %v267, %v267
    %272 = vst [vmem:[%s5] sm:$0xf] %v268
    %273 = vst [vmem:[%s5 + $0x4] sm:$0xf] %v269
  $region29: #{byol_forward.14} parent=0 // pred_fallthru
    _
  // Predicated region
  $region30: #{byol_forward.14} parent=0 // pred_check
    _
  $region31: #{byol_forward.14} parent=0 // pred_check_branch
    %275 = sbr.rel (0) target = $region33
  $region32: #{byol_forward.14} parent=0 // pred_region
    _
  $region33: #{byol_forward.14} parent=0 // pred_fallthru
    _
  // Predicated region
  $region34: #{byol_forward.14} parent=0 // pred_check
    _
  $region35: #{byol_forward.14} parent=0 // pred_check_branch
    %277 = sbr.rel (0) target = $region37
  $region36: #{byol_forward.14} parent=0 // pred_region
    _
  $region37: #{byol_forward.14} parent=0 // pred_fallthru
    _

// kernel: byol_forward.10
$region0: #{byol_forward.10}
  #allocation0 [shape = 'u32[]', space=smem, size = 0x4, offset = 0x4, fixed_abs, tag = 'smem constant byte address 0x4 - core index']
  #allocation1 [shape = 'u32[144,128]{1,0:T(1,128)}', space=vmem, size = 0x12000, scoped, tag = 'internal scratch']
  #allocation2 [shape = 'f32[16,128]{1,0:T(8,128)}', space=vmem, size = 0x2000, scoped, tag = 'scratch operand']
  %s0 = inlined_call_operand.vmem [shape: bf16[16,128], index: 0, kind: input, shape index: {}]
  %s1 = inlined_call_operand.vmem [shape: bf16[128,128], index: 1, kind: input, shape index: {}]
  %s2 = inlined_call_operand.vmem [shape: f32[1,128], index: 2, kind: input, shape index: {}]
  %s3 = inlined_call_operand.vmem [shape: f32[16,128], index: 3, kind: output, shape index: {}]
  %s4 = sld [smem:[#allocation0]]
  $region30: #{byol_forward.10} parent=0
    _
  %s6 = ssub.s32 1, %s4
  %s7 = scalar_select 0, %s6, %s4
  // Predicated region
  $region2: #{byol_forward.10} parent=0 // pred_check
    _
  $region3: #{byol_forward.10} parent=0 // pred_check_branch
    %9 = sbr.rel (0) target = $region5
  $region4: #{byol_forward.10} parent=0 // pred_region
    _
  $region5: #{byol_forward.10} parent=0 // pred_fallthru
    _
  // Predicated region
  $region6: #{byol_forward.10} parent=0 // pred_check
    _
  $region7: #{byol_forward.10} parent=0 // pred_check_branch
    %11 = sbr.rel (0) target = $region9
  $region8: #{byol_forward.10} parent=0 // pred_region
    _
  $region9: #{byol_forward.10} parent=0 // pred_fallthru
    _
  // Predicated region
  $region10: #{byol_forward.10} parent=0 // pred_check
    _
  $region11: #{byol_forward.10} parent=0 // pred_check_branch
    %13 = sbr.rel (0) target = $region13
  $region12: #{byol_forward.10} parent=0 // pred_region
    _
  $region13: #{byol_forward.10} parent=0 // pred_fallthru
    _
  %p15 = scmp.eq.s32.totalorder 0, 0
  // Predicated region
  $region14: #{byol_forward.10} parent=0 // pred_check
    %p16 = pneg %p15
  $region15: #{byol_forward.10} parent=0 // pred_check_branch
    %18 = sbr.rel (%p16) target = $region17
  $region16: #{byol_forward.10} parent=0 // pred_region
    %19 = vst [vmem:[#allocation2] sm:$0xff] 0.0
    %20 = vst [vmem:[#allocation2 + $0x8] sm:$0xff] 0.0
  $region17: #{byol_forward.10} parent=0 // pred_fallthru
    _
  %v21 = vld [vmem:[#allocation2] sm:$0xff]
  %v22 = vld [vmem:[#allocation2 + $0x8] sm:$0xff]
  %v23 = vld [vmem:[%s0] sm:$0xf]
  %v24 = vld [vmem:[%s0 + $0x4] sm:$0xf]
  %v25 = vld [vmem:[%s1] sm:$0xf]
  %v26 = vld [vmem:[%s1 + $0x4] sm:$0xf]
  %v27 = vld [vmem:[%s1 + $0x8] sm:$0xf]
  %v28 = vld [vmem:[%s1 + $0xc] sm:$0xf]
  %v29 = vld [vmem:[%s1 + $0x10] sm:$0xf]
  %v30 = vld [vmem:[%s1 + $0x14] sm:$0xf]
  %v31 = vld [vmem:[%s1 + $0x18] sm:$0xf]
  %v32 = vld [vmem:[%s1 + $0x1c] sm:$0xf]
  %v33 = vld [vmem:[%s1 + $0x20] sm:$0xf]
  %v34 = vld [vmem:[%s1 + $0x24] sm:$0xf]
  %v35 = vld [vmem:[%s1 + $0x28] sm:$0xf]
  %v36 = vld [vmem:[%s1 + $0x2c] sm:$0xf]
  %v37 = vld [vmem:[%s1 + $0x30] sm:$0xf]
  %v38 = vld [vmem:[%s1 + $0x34] sm:$0xf]
  %v39 = vld [vmem:[%s1 + $0x38] sm:$0xf]
  %v40 = vld [vmem:[%s1 + $0x3c] sm:$0xf]
  %v43 = vunpack.c.l.b16 %v23
  %v44 = vunpack.c.l.b16 %v24
  %v45 = vpack.c.b16 %v44, %v43
  %v63 = vunpack.c.l.b16 %v25
  %v64 = vunpack.c.l.b16 %v26
  %v65 = vunpack.c.l.b16 %v27
  %v66 = vunpack.c.l.b16 %v28
  %v67 = vunpack.c.l.b16 %v29
  %v68 = vunpack.c.l.b16 %v30
  %v69 = vunpack.c.l.b16 %v31
  %v70 = vunpack.c.l.b16 %v32
  %v71 = vunpack.c.l.b16 %v33
  %v72 = vunpack.c.l.b16 %v34
  %v73 = vunpack.c.l.b16 %v35
  %v74 = vunpack.c.l.b16 %v36
  %v75 = vunpack.c.l.b16 %v37
  %v76 = vunpack.c.l.b16 %v38
  %v77 = vunpack.c.l.b16 %v39
  %v78 = vunpack.c.l.b16 %v40
  %v79 = vpack.c.b16 %v64, %v63
  %v80 = vpack.c.b16 %v66, %v65
  %v81 = vpack.c.b16 %v68, %v67
  %v82 = vpack.c.b16 %v70, %v69
  %v83 = vpack.c.b16 %v72, %v71
  %v84 = vpack.c.b16 %v74, %v73
  %v85 = vpack.c.b16 %v76, %v75
  %v86 = vpack.c.b16 %v78, %v77
  %95 = vmatprep.subr.bf16.mxu0 0
  %96 = vmatpush1.bf16.msra.mxu0 %v79
  %97 = vmatprep.subr.bf16.mxu0 0
  %98 = vmatpush1.bf16.msra.mxu0 %v80
  %99 = vmatprep.subr.bf16.mxu0 0
  %100 = vmatpush1.bf16.msra.mxu0 %v81
  %101 = vmatprep.subr.bf16.mxu0 0
  %102 = vmatpush1.bf16.msra.mxu0 %v82
  %103 = vmatprep.subr.bf16.mxu0 0
  %104 = vmatpush1.bf16.msra.mxu0 %v83
  %105 = vmatprep.subr.bf16.mxu0 0
  %106 = vmatpush1.bf16.msra.mxu0 %v84
  %107 = vmatprep.subr.bf16.mxu0 0
  %108 = vmatpush1.bf16.msra.mxu0 %v85
  %109 = vmatprep.subr.bf16.mxu0 0
  %110 = vmatpush1.bf16.msra.mxu0 %v86
  %111 = vmatprep.subr.bf16.mxu0 0
  %112 = vmatpush1.bf16.msra.mxu0 0
  %113 = vmatprep.subr.bf16.mxu0 0
  %114 = vmatpush1.bf16.msra.mxu0 0
  %115 = vmatprep.subr.bf16.mxu0 0
  %116 = vmatpush1.bf16.msra.mxu0 0
  %117 = vmatprep.subr.bf16.mxu0 0
  %118 = vmatpush1.bf16.msra.mxu0 0
  %119 = vmatprep.subr.bf16.mxu0 0
  %120 = vmatpush1.bf16.msra.mxu0 0
  %121 = vmatprep.subr.bf16.mxu0 0
  %122 = vmatpush1.bf16.msra.mxu0 0
  %123 = vmatprep.subr.bf16.mxu0 0
  %124 = vmatpush1.bf16.msra.mxu0 0
  %125 = vmatprep.subr.bf16.mxu0 0
  %126 = vmatpush1.bf16.msra.mxu0 0
  %127 = vmatprep.mubr.bf16.mxu0 0
  %128 = vmatmul.mubr.bf16.gmra.mrb[0].mxu0 %v45
  %v129 = vpop.f32.mrb[0].mxu0
  %v130 = vadd.f32 0.0, %v129
  %v131 = vpop.f32.mrb[0].mxu0
  %v132 = vpop.f32.mrb[0].mxu0
  %v133 = vadd.f32 0.0, %v132
  %v134 = vpop.f32.mrb[0].mxu0
  %135 = vdwg.mxu0
  %v136 = vadd.f32 %v21, %v130
  %v137 = vadd.f32 %v22, %v133
  %138 = vst [vmem:[#allocation2] sm:$0xff] %v136
  %139 = vst [vmem:[#allocation2 + $0x8] sm:$0xff] %v137
  // Predicated region
  $region18: #{byol_forward.10} parent=0 // pred_check
    %p140 = pneg %p15
  $region19: #{byol_forward.10} parent=0 // pred_check_branch
    %142 = sbr.rel (%p140) target = $region21
  $region20: #{byol_forward.10} parent=0 // pred_region
    %v143 = vld [vmem:[#allocation2] sm:$0xff]
    %v144 = vld [vmem:[#allocation2 + $0x8] sm:$0xff]
    %v145 = vld [vmem:[%s2] sm:$0x1]
    %v147 = vlaneseq
    %v148 = vshrl.u32 %v147, 7
    %v149 = vsub.s32 0, %v148
    %v150 = vrot.slane %v145, %v149
    %v152 = vadd.f32 %v143, %v150
    %v153 = vadd.f32 %v144, %v150
    %154 = vst [vmem:[%s3] sm:$0xff] %v152
    %155 = vst [vmem:[%s3 + $0x8] sm:$0xff] %v153
  $region21: #{byol_forward.10} parent=0 // pred_fallthru
    _
  // Predicated region
  $region22: #{byol_forward.10} parent=0 // pred_check
    _
  $region23: #{byol_forward.10} parent=0 // pred_check_branch
    %157 = sbr.rel (0) target = $region25
  $region24: #{byol_forward.10} parent=0 // pred_region
    _
  $region25: #{byol_forward.10} parent=0 // pred_fallthru
    _
  // Predicated region
  $region26: #{byol_forward.10} parent=0 // pred_check
    _
  $region27: #{byol_forward.10} parent=0 // pred_check_branch
    %159 = sbr.rel (0) target = $region29
  $region28: #{byol_forward.10} parent=0 // pred_region
    _
  $region29: #{byol_forward.10} parent=0 // pred_fallthru
    _

</llo_original>
